<compile_context>
chip_gen: v7x
topology: tpu7x:2x2x1
jax: 0.10.0
libtpu: 0.0.40
codegen_flags: <defaults>
</compile_context>

<pallas_src>
import functools

import jax
import jax.numpy as jnp
from jax import lax
from jax.experimental import pallas as pl
from jax.experimental.pallas import tpu as pltpu


# ---------------------------------------------------------------------------
# Static honeycomb boundary tables (copied from the PyTorch module).
# ---------------------------------------------------------------------------

_PAD32_PAD = [
    (0, 0), (0, 1), (0, 2), (0, 3), (0, 4), (0, 5), (1, 0), (1, 6), (2, 0),
    (2, 6), (3, 0), (3, 7), (4, 0), (4, 8), (5, 1), (5, 9), (6, 1), (6, 9),
    (7, 2), (7, 9), (8, 3), (8, 9), (9, 4), (9, 5), (9, 6), (9, 7), (9, 8),
    (9, 9)]
_PAD32_SRC = [
    (8, 4), (8, 5), (8, 6), (8, 7), (8, 8), (4, 1), (5, 8), (5, 2), (6, 8),
    (6, 2), (7, 9), (7, 3), (8, 8), (8, 4), (1, 5), (1, 1), (2, 5), (2, 1),
    (3, 6), (3, 1), (4, 7), (4, 1), (5, 8), (1, 1), (1, 2), (1, 3), (1, 4),
    (1, 5)]

_PAD98_PAD = [
    (0, 0), (0, 1), (0, 2), (0, 3), (0, 4), (0, 5), (0, 6), (0, 7), (0, 8),
    (0, 9), (0, 10), (1, 0), (1, 10), (2, 0), (2, 10), (2, 11), (2, 12),
    (3, 0), (3, 12), (4, 0), (4, 12), (4, 13), (5, 0), (5, 13), (5, 14),
    (6, 0), (6, 14), (6, 15), (7, 0), (7, 15), (8, 0), (8, 1), (8, 2),
    (8, 15), (9, 2), (9, 15), (10, 2), (10, 3), (10, 4), (10, 15), (11, 4),
    (11, 15), (12, 4), (12, 5), (12, 15), (13, 5), (13, 6), (13, 15),
    (14, 6), (14, 7), (14, 15), (15, 7), (15, 8), (15, 9), (15, 10),
    (15, 11), (15, 12), (15, 13), (15, 14), (15, 15)]
_PAD98_SRC = [
    (7, 14), (14, 8), (14, 9), (14, 10), (14, 11), (14, 12), (14, 13),
    (14, 14), (7, 1), (7, 2), (7, 3), (8, 14), (8, 3), (9, 14), (9, 3),
    (9, 4), (9, 5), (10, 14), (10, 5), (11, 14), (11, 5), (11, 6), (12, 14),
    (12, 6), (12, 7), (13, 14), (13, 7), (13, 8), (14, 14), (14, 8), (1, 7),
    (1, 8), (1, 9), (1, 1), (2, 9), (2, 1), (3, 9), (3, 10), (3, 11), (3, 1),
    (4, 11), (4, 1), (5, 11), (5, 12), (5, 1), (6, 12), (6, 13), (6, 1),
    (7, 13), (7, 14), (7, 1), (8, 14), (1, 1), (1, 2), (1, 3), (1, 4),
    (1, 5), (1, 6), (1, 7), (1, 8)]


def _mask_positions(W):
    """Output pixels that mask_honeycomb{32,98} zeroes."""
    pos = []
    if W == 8:
        for c in (5, 6, 7):
            pos += [(0, c), (1, c)]
        pos += [(2, 6), (2, 7), (3, 7)]
        for r in range(4, 8):
            pos.append((r, 0))
        pos += [(6, 1), (7, 1), (7, 2)]
    elif W == 14:
        for c in range(9, 14):
            pos += [(0, c), (1, c)]
        for c in range(11, 14):
            pos += [(2, c), (3, c)]
        pos += [(4, 12), (4, 13), (5, 13)]
        for r in range(7, 14):
            pos += [(r, 0), (r, 1)]
        for r in range(9, 14):
            pos += [(r, 2), (r, 3)]
        for r in range(11, 14):
            pos.append((r, 4))
        pos += [(12, 5), (13, 5), (13, 6)]
    else:
        raise ValueError("honeycomb conv expects spatial width 8 or 14")
    return pos


def _honeycomb_pad(x):
    """Zero-pad by 1 and overwrite border pixels from fixed source positions."""
    W = x.shape[-1]
    if W == 8:
        pad_idx, src_idx = _PAD32_PAD, _PAD32_SRC
    elif W == 14:
        pad_idx, src_idx = _PAD98_PAD, _PAD98_SRC
    else:
        raise ValueError("honeycomb conv expects spatial width 8 or 14")
    xp = jnp.pad(x, ((0, 0), (0, 0), (1, 1), (1, 1)))
    pr = jnp.array([p[0] for p in pad_idx], jnp.int32)
    pc = jnp.array([p[1] for p in pad_idx], jnp.int32)
    sr = jnp.array([s[0] for s in src_idx], jnp.int32)
    sc = jnp.array([s[1] for s in src_idx], jnp.int32)
    vals = xp[:, :, sr, sc]                     # gather first (torch semantics)
    return xp.at[:, :, pr, pc].set(vals)


def _keep_mask_hw(H, W):
    """(H, W) float mask: 1 everywhere, 0 at the honeycomb-masked pixels."""
    m = jnp.ones((H, W), jnp.float32)
    pos = _mask_positions(W)
    r = jnp.array([p[0] for p in pos], jnp.int32)
    c = jnp.array([p[1] for p in pos], jnp.int32)
    return m.at[r, c].set(0.0)


# ---------------------------------------------------------------------------
# Pallas kernel: fused im2col-matmul conv + bias + honeycomb mask.
#   One lane-dense tile per grid step; batch*pixels on the lane axis.
# ---------------------------------------------------------------------------

def _honeycomb_conv_kernel(p_ref, w_ref, b_ref, m_ref, o_ref):
    # p_ref: (Kp, TN)    im2col patch tile, lanes = (batch, row, col)
    # w_ref: (Cout, Kp)  flattened conv weight (resident, constant index_map)
    # b_ref: (Cout, 1)   bias (resident)
    # m_ref: (1, TN)     honeycomb keep-mask tile
    # o_ref: (Cout, TN)  lane-dense output tile
    acc = jnp.dot(w_ref[...], p_ref[...], preferred_element_type=jnp.float32)
    y = acc + b_ref[...].astype(jnp.float32)
    o_ref[...] = jnp.where(m_ref[...] > 0.5, y, 0.0)


def honeycomb_conv2d_v5(x, weight, bias, *, use_bf16_inputs=False, lane_tile=None):
    """x: (B, Cin, H, W); weight: (Cout, Cin, 3, 3); bias: (Cout,). -> (B, Cout, H, W)."""
    B, Cin, H, W = x.shape
    Cout = weight.shape[0]
    HW = H * W
    N = B * HW                                  # lane axis = (batch, row, col)

    xp = _honeycomb_pad(x.astype(jnp.float32))  # (B, Cin, H+2, W+2)

    # TODO(synk): im2col is wrapper-side layout plumbing (see header comment).
    # Rows ordered (ky, kx, cin); columns ordered (b, r, c) -> lane axis.
    taps = [xp[:, :, ky:ky + H, kx:kx + W] for ky in range(3) for kx in range(3)]
    patches = jnp.stack(taps, axis=0)                       # (9, B, Cin, H, W)
    patches = jnp.transpose(patches, (0, 2, 1, 3, 4))       # (9, Cin, B, H, W)
    patches = patches.reshape(9 * Cin, N)                   # (9*Cin, B*H*W)

    # Contraction dim padded to a sublane multiple (e.g. 36 -> 40).
    K = 9 * Cin
    Kp = ((K + 7) // 8) * 8

    # Lane tiling: multiples of 128; larger tiles once there is enough work.
    if lane_tile is None:
        TN = 512 if N >= 2048 else 128
    else:
        TN = lane_tile
    Npad = ((N + TN - 1) // TN) * TN

    patches = jnp.pad(patches, ((0, Kp - K), (0, Npad - N)))

    # Flatten conv weight in matching (ky, kx, cin) column order, pad K.
    w2 = jnp.transpose(weight.astype(jnp.float32), (0, 2, 3, 1)).reshape(Cout, K)
    w2 = jnp.pad(w2, ((0, 0), (0, Kp - K)))
    b2 = bias.astype(jnp.float32).reshape(Cout, 1)

    # Keep-mask broadcast across batch, same (b, r, c) lane ordering.
    keep = _keep_mask_hw(H, W).reshape(-1)                  # (H*W,)
    mask = jnp.tile(keep, (B,))                             # (B*H*W,)
    mask = jnp.pad(mask, (0, Npad - N)).reshape(1, Npad)

    if use_bf16_inputs:                                     # v6e/v7x: halve HBM bytes
        patches = patches.astype(jnp.bfloat16)
        w2 = w2.astype(jnp.bfloat16)

    grid = (Npad // TN,)

    out_flat = pl.pallas_call(
        _honeycomb_conv_kernel,
        out_shape=jax.ShapeDtypeStruct((Cout, Npad), jnp.float32),
        grid_spec=pltpu.PrefetchScalarGridSpec(
            num_scalar_prefetch=0,
            grid=grid,
            in_specs=[
                pl.BlockSpec((Kp, TN), lambda j: (0, j)),      # patches tile
                pl.BlockSpec((Cout, Kp), lambda j: (0, 0)),    # weight (resident)
                pl.BlockSpec((Cout, 1), lambda j: (0, 0)),     # bias   (resident)
                pl.BlockSpec((1, TN), lambda j: (0, j)),       # keep-mask tile
            ],
            out_specs=pl.BlockSpec((Cout, TN), lambda j: (0, j)),
        ),
        compiler_params=pltpu.CompilerParams(
            dimension_semantics=("parallel",)),
    )(patches, w2, b2, mask)

    out = out_flat[:, :N].reshape(Cout, B, H, W)
    return jnp.transpose(out, (1, 0, 2, 3))


# ---------------------------------------------------------------------------
# Pure-JAX reference mirroring the PyTorch forward.
# ---------------------------------------------------------------------------

def _reference(x, weight, bias):
    xp = _honeycomb_pad(x.astype(jnp.float32))
    y = lax.conv_general_dilated(
        xp, weight.astype(jnp.float32),
        window_strides=(1, 1), padding="VALID",
        dimension_numbers=("NCHW", "OIHW", "NCHW"))
    y = y + bias.reshape(1, -1, 1, 1)
    H, W = x.shape[-2], x.shape[-1]
    return y * _keep_mask_hw(H, W).reshape(1, 1, H, W)


if __name__ == "__main__":
    B, Cin, Cout = 2, 4, 8
    H = W = 8                               # honeycomb32 path

    key = jax.random.PRNGKey(0)
    kx_, kw, kb = jax.random.split(key, 3)
    x = jax.random.normal(kx_, (B, Cin, H, W), jnp.float32)
    fan_in = Cin * 9
    bound = 1.0 / (fan_in ** 0.5)
    weight = jax.random.uniform(kw, (Cout, Cin, 3, 3), jnp.float32, -bound, bound)
    bias = jax.random.uniform(kb, (Cout,), jnp.float32, -bound, bound)

    # f32 path (default, bit-faithful to the module's f32 conv).
    out = jax.block_until_ready(jax.jit(honeycomb_conv2d_v5)(x, weight, bias))
    ref = _reference(x, weight, bias)
    assert out.shape == (B, Cout, H, W)
    assert jnp.allclose(out, ref, atol=1e-5, rtol=1e-5), "mismatch vs JAX reference (8x8)"

    # 14x14 (honeycomb98) path: B*H*W = 392 -> 4 lane tiles of 128 (multi-step grid).
    x98 = jax.random.normal(jax.random.PRNGKey(1), (B, Cin, 14, 14), jnp.float32)
    out98 = jax.block_until_ready(jax.jit(honeycomb_conv2d_v5)(x98, weight, bias))
    ref98 = _reference(x98, weight, bias)
    assert jnp.allclose(out98, ref98, atol=1e-5, rtol=1e-5), "mismatch vs JAX reference (14x14)"

    # bf16 MXU-feed path (v6e/v7x feedback): inputs rounded, accumulation in f32.
    bf16_fwd = jax.jit(functools.partial(honeycomb_conv2d_v5, use_bf16_inputs=True))
    out_bf16 = jax.block_until_ready(bf16_fwd(x, weight, bias))
    assert jnp.allclose(out_bf16, ref, atol=5e-2, rtol=5e-2), "mismatch vs JAX reference (bf16)"

    print("KERNEL_OK")
</pallas_src>

<mosaic_0001>
module attributes {stable_mosaic.version = 11 : i64} {
  func.func @_honeycomb_conv_kernel(%arg0: i32, %arg1: memref<40x128xf32, #tpu.memory_space<vmem>>, %arg2: memref<8x40xf32, #tpu.memory_space<vmem>>, %arg3: memref<8x1xf32, #tpu.memory_space<vmem>>, %arg4: memref<1x128xf32, #tpu.memory_space<vmem>>, %arg5: memref<8x128xf32, #tpu.memory_space<vmem>>) attributes {dimension_semantics = [#tpu.dimension_semantics<parallel>], iteration_bounds = array<i64: 1>, scalar_prefetch = 0 : i64, scratch_operands = 0 : i64, tpu.core_type = #tpu.core_type<tc>, window_params = [{transform_indices = @transform_0, window_bounds = array<i64: 40, 128>}, {pipeline_mode = #tpu.pipeline_mode<synchronous>, transform_indices = @transform_1, window_bounds = array<i64: 8, 40>}, {pipeline_mode = #tpu.pipeline_mode<synchronous>, transform_indices = @transform_2, window_bounds = array<i64: 8, 1>}, {transform_indices = @transform_3, window_bounds = array<i64: 1, 128>}, {transform_indices = @transform_4, window_bounds = array<i64: 8, 128>}]} {
    %c0 = arith.constant 0 : index
    %c0_0 = arith.constant 0 : index
    %0 = vector.load %arg2[%c0, %c0_0] : memref<8x40xf32, #tpu.memory_space<vmem>>, vector<8x40xf32>
    %c0_1 = arith.constant 0 : index
    %c0_2 = arith.constant 0 : index
    %1 = vector.load %arg1[%c0_1, %c0_2] : memref<40x128xf32, #tpu.memory_space<vmem>>, vector<40x128xf32>
    %cst = arith.constant dense<0.000000e+00> : vector<8x128xf32>
    %2 = tpu.matmul %0, %1, %cst {dimension_numbers = #tpu.dot_dimension_numbers<[1], [0], [0], [1], [0, 0, 1, 1], [], []>} : vector<8x40xf32>, vector<40x128xf32>, vector<8x128xf32> -> vector<8x128xf32>
    %c0_3 = arith.constant 0 : index
    %c0_4 = arith.constant 0 : index
    %3 = vector.load %arg3[%c0_3, %c0_4] : memref<8x1xf32, #tpu.memory_space<vmem>>, vector<8x1xf32>
    %4 = vector.broadcast %3 : vector<8x1xf32> to vector<8x128xf32>
    %5 = arith.addf %2, %4 : vector<8x128xf32>
    %c0_5 = arith.constant 0 : index
    %c0_6 = arith.constant 0 : index
    %6 = vector.load %arg4[%c0_5, %c0_6] : memref<1x128xf32, #tpu.memory_space<vmem>>, vector<1x128xf32>
    %cst_7 = arith.constant 5.000000e-01 : f32
    %7 = vector.broadcast %cst_7 : f32 to vector<1x128xf32>
    %8 = arith.cmpf ogt, %6, %7 : vector<1x128xf32>
    %cst_8 = arith.constant 0.000000e+00 : f32
    %9 = vector.shape_cast %8 : vector<1x128xi1> to vector<1x128xi1>
    %10 = vector.broadcast %9 : vector<1x128xi1> to vector<8x128xi1>
    %11 = vector.broadcast %cst_8 : f32 to vector<8x128xf32>
    %12 = arith.select %10, %5, %11 : vector<8x128xi1>, vector<8x128xf32>
    %c0_9 = arith.constant 0 : index
    %c0_10 = arith.constant 0 : index
    %13 = vector.load %arg5[%c0_9, %c0_10] : memref<8x128xf32, #tpu.memory_space<vmem>>, vector<8x128xf32>
    tpu.vector_store %arg5[%c0_9, %c0_10], %12 {strides = array<i32>} : memref<8x128xf32, #tpu.memory_space<vmem>>, vector<8x128xf32>,
    return
  }
  func.func @transform_0(%arg0: i32) -> (i32, i32) {
    %c0_i32 = arith.constant 0 : i32
    %c0_i32_0 = arith.constant 0 : i32
    return %c0_i32, %arg0 : i32, i32
  }
  func.func @transform_1(%arg0: i32) -> (i32, i32) {
    %c0_i32 = arith.constant 0 : i32
    %c0_i32_0 = arith.constant 0 : i32
    %c0_i32_1 = arith.constant 0 : i32
    return %c0_i32, %c0_i32_0 : i32, i32
  }
  func.func @transform_2(%arg0: i32) -> (i32, i32) {
    %c0_i32 = arith.constant 0 : i32
    %c0_i32_0 = arith.constant 0 : i32
    %c0_i32_1 = arith.constant 0 : i32
    return %c0_i32, %c0_i32_0 : i32, i32
  }
  func.func @transform_3(%arg0: i32) -> (i32, i32) {
    %c0_i32 = arith.constant 0 : i32
    %c0_i32_0 = arith.constant 0 : i32
    return %c0_i32, %arg0 : i32, i32
  }
  func.func @transform_4(%arg0: i32) -> (i32, i32) {
    %c0_i32 = arith.constant 0 : i32
    %c0_i32_0 = arith.constant 0 : i32
    return %c0_i32, %arg0 : i32, i32
  }
}

</mosaic_0001>

<llo_original>
// kernel: tile.6
$region0: #{tile.6}
  #allocation0 [shape = 's32[1]{0}', space=sflag, size = 0x4, scoped, tag = 'scoped memory for tile.6']
  %s0 = inlined_call_operand.vmem [shape: f32[64], index: 0, kind: input, shape index: {}]
  %s1 = inlined_call_operand.vmem [shape: f32[2,64], index: 1, kind: output, shape index: {}]
  // Predicated region
  $region2: #{tile.6} parent=0 // pred_check
    _
  $region3: #{tile.6} parent=0 // pred_check_branch
    %3 = sbr.rel (0) target = $region5
  $region4: #{tile.6} parent=0 // pred_region
    _
  $region5: #{tile.6} parent=0 // pred_fallthru
    _
  %v4 = vld [vmem:[%s0] ss:$0 sm:$0xff]
  %5 = vst [vmem:[%s1] sm:$0x3] %v4

// kernel: honeycomb_conv2d_v5.1
$region0: #{honeycomb_conv2d_v5.1}
  #allocation0 [shape = 'u32[]', space=smem, size = 0x4, offset = 0x4, fixed_abs, tag = 'smem constant byte address 0x4 - core index']
  #allocation1 [shape = 'u32[144,128]{1,0:T(1,128)}', space=vmem, size = 0x12000, scoped, tag = 'internal scratch']
  %s0 = inlined_call_operand.vmem [shape: f32[40,128], index: 0, kind: input, shape index: {}]
  %s1 = inlined_call_operand.vmem [shape: f32[8,40], index: 1, kind: input, shape index: {}]
  %s2 = inlined_call_operand.vmem [shape: f32[8,1], index: 2, kind: input, shape index: {}]
  %s3 = inlined_call_operand.vmem [shape: f32[1,128], index: 3, kind: input, shape index: {}]
  %s4 = inlined_call_operand.vmem [shape: f32[8,128], index: 4, kind: output, shape index: {}]
  %s5 = sld [smem:[#allocation0]]
  $region26: #{honeycomb_conv2d_v5.1} parent=0
    _
  %s7 = ssub.s32 1, %s5
  %s8 = scalar_select 0, %s7, %s5
  // Predicated region
  $region2: #{honeycomb_conv2d_v5.1} parent=0 // pred_check
    _
  $region3: #{honeycomb_conv2d_v5.1} parent=0 // pred_check_branch
    %10 = sbr.rel (0) target = $region5
  $region4: #{honeycomb_conv2d_v5.1} parent=0 // pred_region
    _
  $region5: #{honeycomb_conv2d_v5.1} parent=0 // pred_fallthru
    _
  // Predicated region
  $region6: #{honeycomb_conv2d_v5.1} parent=0 // pred_check
    _
  $region7: #{honeycomb_conv2d_v5.1} parent=0 // pred_check_branch
    %12 = sbr.rel (0) target = $region9
  $region8: #{honeycomb_conv2d_v5.1} parent=0 // pred_region
    _
  $region9: #{honeycomb_conv2d_v5.1} parent=0 // pred_fallthru
    _
  // Predicated region
  $region10: #{honeycomb_conv2d_v5.1} parent=0 // pred_check
    _
  $region11: #{honeycomb_conv2d_v5.1} parent=0 // pred_check_branch
    %14 = sbr.rel (0) target = $region13
  $region12: #{honeycomb_conv2d_v5.1} parent=0 // pred_region
    _
  $region13: #{honeycomb_conv2d_v5.1} parent=0 // pred_fallthru
    _
  // Predicated region
  $region14: #{honeycomb_conv2d_v5.1} parent=0 // pred_check
    _
  $region15: #{honeycomb_conv2d_v5.1} parent=0 // pred_check_branch
    %16 = sbr.rel (0) target = $region17
  $region16: #{honeycomb_conv2d_v5.1} parent=0 // pred_region
    _
  $region17: #{honeycomb_conv2d_v5.1} parent=0 // pred_fallthru
    _
  %v17 = vld [vmem:[%s1] sm:$0xff]
  %v18 = vld [vmem:[%s0] sm:$0xff]
  %v19 = vld [vmem:[%s0 + $0x8] sm:$0xff]
  %v20 = vld [vmem:[%s0 + $0x10] sm:$0xff]
  %v21 = vld [vmem:[%s0 + $0x18] sm:$0xff]
  %v22 = vld [vmem:[%s0 + $0x20] sm:$0xff]
  %v23 = vld [vmem:[%s2] sm:$0xff]
  %25 = vset.pattern.permute.xlu0 0
  %26 = vperm.xlu0 %25, %v23
  %v27 = vpop.permute.xlu0 %26
  %vm29 = vcmask 326656
  %v31 = vsel %vm29, %v17, 0
  %33 = vmatprep.subr.mxu0 0.0
  %34 = vmatpush1.msra.mxu0 %v18
  %35 = vmatprep.subr.mxu0 0.0
  %36 = vmatpush1.msra.mxu0 %v19
  %37 = vmatprep.subr.mxu0 0.0
  %38 = vmatpush1.msra.mxu0 %v20
  %39 = vmatprep.subr.mxu0 0.0
  %40 = vmatpush1.msra.mxu0 %v21
  %41 = vmatprep.subr.mxu0 0.0
  %42 = vmatpush1.msra.mxu0 %v22
  %43 = vmatprep.subr.mxu0 0.0
  %44 = vmatpush1.msra.mxu0 0.0
  %45 = vmatprep.subr.mxu0 0.0
  %46 = vmatpush1.msra.mxu0 0.0
  %47 = vmatprep.subr.mxu0 0.0
  %48 = vmatpush1.msra.mxu0 0.0
  %49 = vmatprep.subr.mxu0 0.0
  %50 = vmatpush1.msra.mxu0 0.0
  %51 = vmatprep.subr.mxu0 0.0
  %52 = vmatpush1.msra.mxu0 0.0
  %53 = vmatprep.subr.mxu0 0.0
  %54 = vmatpush1.msra.mxu0 0.0
  %55 = vmatprep.subr.mxu0 0.0
  %56 = vmatpush1.msra.mxu0 0.0
  %57 = vmatprep.subr.mxu0 0.0
  %58 = vmatpush1.msra.mxu0 0.0
  %59 = vmatprep.subr.mxu0 0.0
  %60 = vmatpush1.msra.mxu0 0.0
  %61 = vmatprep.subr.mxu0 0.0
  %62 = vmatpush1.msra.mxu0 0.0
  %63 = vmatprep.subr.mxu0 0.0
  %64 = vmatpush1.msra.mxu0 0.0
  %65 = vmatprep.subr.mxu0 0.0
  %66 = vmatpush1.msra.mxu0 0.0
  %67 = vmatprep.subr.mxu0 0.0
  %68 = vmatpush1.msra.mxu0 0.0
  %69 = vmatprep.subr.mxu0 0.0
  %70 = vmatpush1.msra.mxu0 0.0
  %71 = vmatprep.subr.mxu0 0.0
  %72 = vmatpush1.msra.mxu0 0.0
  %73 = vmatprep.subr.mxu0 0.0
  %74 = vmatpush1.msra.mxu0 0.0
  %75 = vmatprep.subr.mxu0 0.0
  %76 = vmatpush1.msra.mxu0 0.0
  %77 = vmatprep.subr.mxu0 0.0
  %78 = vmatpush1.msra.mxu0 0.0
  %79 = vmatprep.subr.mxu0 0.0
  %80 = vmatpush1.msra.mxu0 0.0
  %81 = vmatprep.subr.mxu0 0.0
  %82 = vmatpush1.msra.mxu0 0.0
  %83 = vmatprep.subr.mxu0 0.0
  %84 = vmatpush1.msra.mxu0 0.0
  %85 = vmatprep.subr.mxu0 0.0
  %86 = vmatpush1.msra.mxu0 0.0
  %87 = vmatprep.subr.mxu0 0.0
  %88 = vmatpush1.msra.mxu0 0.0
  %89 = vmatprep.subr.mxu0 0.0
  %90 = vmatpush1.msra.mxu0 0.0
  %91 = vmatprep.subr.mxu0 0.0
  %92 = vmatpush1.msra.mxu0 0.0
  %93 = vmatprep.subr.mxu0 0.0
  %94 = vmatpush1.msra.mxu0 0.0
  %95 = vmatprep.subr.mxu0 0.0
  %96 = vmatpush1.msra.mxu0 0.0
  %97 = vmatprep.mubr.f32.mxu0 0.0
  %98 = vmatmul.mubr.f32.gmra.mrb[0].mxu0 %v31
  %v99 = vpop.f32.mrb[0].mxu0
  %v100 = vadd.f32 %v27, %v99
  %v101 = vpop.f32.mrb[0].mxu0
  %102 = vdwg.mxu0
  %v103 = vld [vmem:[%s3] sm:$0x1]
  %vm104 = vcmp.gt.f32.partialorder %v103, 0.5
  %v105 = vsel %vm104, 1, 0
  %v106 = vlaneseq
  %v107 = vshrl.u32 %v106, 7
  %v108 = vsub.s32 0, %v107
  %v109 = vrot.slane %v105, %v108
  %vm110 = vcmp.eq.s32.totalorder %v109, 1
  %v111 = vsel %vm110, %v100, 0.0
  %112 = vst [vmem:[%s4] sm:$0xff] %v111
  // Predicated region
  $region18: #{honeycomb_conv2d_v5.1} parent=0 // pred_check
    _
  $region19: #{honeycomb_conv2d_v5.1} parent=0 // pred_check_branch
    %114 = sbr.rel (0) target = $region21
  $region20: #{honeycomb_conv2d_v5.1} parent=0 // pred_region
    _
  $region21: #{honeycomb_conv2d_v5.1} parent=0 // pred_fallthru
    _
  // Predicated region
  $region22: #{honeycomb_conv2d_v5.1} parent=0 // pred_check
    _
  $region23: #{honeycomb_conv2d_v5.1} parent=0 // pred_check_branch
    %116 = sbr.rel (0) target = $region25
  $region24: #{honeycomb_conv2d_v5.1} parent=0 // pred_region
    _
  $region25: #{honeycomb_conv2d_v5.1} parent=0 // pred_fallthru
    _

</llo_original>
